<compile_context>
chip_gen: v7x
topology: tpu7x:2x2x1
jax: 0.10.0
libtpu: 0.0.40
codegen_flags: <defaults>
</compile_context>

<pallas_src>
import functools
import math

import jax
import jax.numpy as jnp
from jax.experimental import pallas as pl
from jax.experimental.pallas import tpu as pltpu


def _round_up(n, m):
    return ((n + m - 1) // m) * m


def _encoder_kernel(offsets, widths, *refs):
    """Fused MLP: Linear(cat([h, labels])) -> LeakyReLU(0.2) per hidden layer,
    final Linear(cat([h, labels])) with no activation.  Dropout(0.0) = id."""
    n_layers = len(offsets)
    x_ref, lab_ref, wl_all_ref, b_all_ref = refs[:4]
    wx_refs = refs[4:4 + n_layers]
    out_ref = refs[4 + n_layers]

    # One K=n_classes MXU push for ALL layers' label contributions + biases.
    lab_all = jnp.dot(lab_ref[...], wl_all_ref[...],
                      preferred_element_type=jnp.float32)
    lab_all = lab_all + b_all_ref[...]

    h = x_ref[...]                      # bf16 batch tile
    for i in range(n_layers):
        off, w = offsets[i], widths[i]  # static, lane-aligned (multiples of 128)
        z = jnp.dot(h.astype(jnp.bfloat16), wx_refs[i][...],
                    preferred_element_type=jnp.float32)
        z = z + lab_all[:, off:off + w]
        if i < n_layers - 1:
            h = jnp.where(z > 0, z, 0.2 * z)   # LeakyReLU(0.2); Dropout(0)=id
        else:
            h = z
    out_ref[...] = h                    # single lane-dense f32 slab store


class EncoderPallas:
    """JAX/Pallas re-implementation of the PyTorch `Encoder` module."""

    def __init__(self, input_dim, n_classes, latent_dim,
                 hidden_dims=None, dropout_prob=0.0, key=None):
        if hidden_dims is None:
            hidden_dims = [500, 250, 125]
        # TODO(synk): training-time dropout (p>0) not implemented; the
        # reference default (0.0) makes it the identity.
        assert dropout_prob == 0.0
        self.input_dim = input_dim
        self.n_classes = n_classes
        self.latent_dim = latent_dim
        self.hidden_dims = list(hidden_dims)

        if key is None:
            key = jax.random.PRNGKey(0)

        # Layer sizes (mirrors PyTorch __init__); pad all feature dims to 128.
        out_dims = self.hidden_dims + [2 * latent_dim]
        self.in_pad = _round_up(input_dim, 128)
        self.out_pads = [_round_up(d, 128) for d in out_dims]
        in_dims_x = [input_dim] + self.hidden_dims          # activation fan-in
        in_pads_x = [self.in_pad] + self.out_pads[:-1]

        # kaiming_normal_(fan_in, relu): std = sqrt(2 / fan_in); bias = 0.
        # Split each weight into activation part (wx) and label part (wl) so
        #   Linear(cat([h, labels])) == h @ wx + labels @ wl + b.
        wx_list, wl_cols, b_cols = [], [], []
        for fin_x, fout, fin_x_pad, fout_pad in zip(
                in_dims_x, out_dims, in_pads_x, self.out_pads):
            fin = fin_x + n_classes
            key, wk = jax.random.split(key)
            std = math.sqrt(2.0 / fin)
            w = jax.random.normal(wk, (fout, fin), dtype=jnp.float32) * std
            wx = jnp.transpose(w[:, :fin_x])          # [fin_x, fout]
            wl = jnp.transpose(w[:, fin_x:])          # [n_classes, fout]
            wx_p = jnp.zeros((fin_x_pad, fout_pad), jnp.float32)
            wx_p = wx_p.at[:fin_x, :fout].set(wx)
            wl_p = jnp.zeros((n_classes, fout_pad), jnp.float32)
            wl_p = wl_p.at[:, :fout].set(wl)
            b_p = jnp.zeros((fout_pad,), jnp.float32)  # bias init = 0
            wx_list.append(wx_p.astype(jnp.bfloat16))
            wl_cols.append(wl_p)
            b_cols.append(b_p)

        self.wx = wx_list
        self.wl_all = jnp.concatenate(wl_cols, axis=1).astype(jnp.bfloat16)
        self.b_all = jnp.concatenate(b_cols)[None, :]          # [1, total_out]
        self.offsets = []
        off = 0
        for w in self.out_pads:
            self.offsets.append(off)
            off += w
        self.total_out = off

    def __call__(self, x, labels):
        B = x.shape[0]
        n_layers = len(self.wx)
        # 256-row tiles fill the 256-wide v6e/v7x MXU; for tiny batches just
        # round up to the 8-sublane granule (single grid step).
        TB = 256 if B >= 256 else _round_up(B, 8)
        B_pad = _round_up(B, TB)

        xp = jnp.zeros((B_pad, self.in_pad), jnp.bfloat16)
        xp = xp.at[:B, :self.input_dim].set(x.astype(jnp.bfloat16))
        lp = jnp.zeros((B_pad, self.n_classes), jnp.bfloat16)
        lp = lp.at[:B, :].set(labels.astype(jnp.bfloat16))

        grid = (B_pad // TB,)
        x_spec = pl.BlockSpec((TB, self.in_pad), lambda i: (i, 0))
        lab_spec = pl.BlockSpec((TB, self.n_classes), lambda i: (i, 0))
        # Weights/bias: constant index_map -> VMEM-resident across batch tiles.
        wl_spec = pl.BlockSpec(self.wl_all.shape, lambda i: (0, 0))
        b_spec = pl.BlockSpec(self.b_all.shape, lambda i: (0, 0))
        wx_specs = [pl.BlockSpec(w.shape, lambda i: (0, 0)) for w in self.wx]
        out_spec = pl.BlockSpec((TB, self.out_pads[-1]), lambda i: (i, 0))

        # Cost estimate: 2*M*K*N per matmul (activation chains + fused label
        # matmul), bytes = weights + activations + output.
        flops = 2 * B_pad * (sum(w.shape[0] * w.shape[1] for w in self.wx)
                             + self.wl_all.shape[0] * self.wl_all.shape[1])
        bytes_accessed = (sum(w.size * 2 for w in self.wx)
                          + self.wl_all.size * 2 + self.b_all.size * 4
                          + xp.size * 2 + lp.size * 2
                          + B_pad * self.out_pads[-1] * 4)
        cost = pl.CostEstimate(flops=flops, transcendentals=0,
                               bytes_accessed=bytes_accessed)

        # VMEM budget (sized against 64 MiB v7x): resident weights +
        # double-buffered I/O tiles + live f32 activations, plus headroom.
        weight_bytes = (sum(w.size * 2 for w in self.wx)
                        + self.wl_all.size * 2 + self.b_all.size * 4)
        io_tile_bytes = 2 * (TB * self.in_pad * 2
                             + TB * self.n_classes * 2
                             + TB * self.out_pads[-1] * 4)
        act_bytes = 2 * TB * (self.total_out + max(self.out_pads)) * 4
        vmem_limit = min(weight_bytes + io_tile_bytes + act_bytes + (8 << 20),
                         64 << 20)

        kernel = functools.partial(_encoder_kernel,
                                   tuple(self.offsets), tuple(self.out_pads))

        out = pl.pallas_call(
            kernel,
            out_shape=jax.ShapeDtypeStruct((B_pad, self.out_pads[-1]),
                                           jnp.float32),
            grid=grid,
            in_specs=[x_spec, lab_spec, wl_spec, b_spec, *wx_specs],
            out_specs=out_spec,
            compiler_params=pltpu.CompilerParams(
                dimension_semantics=("parallel",),
                vmem_limit_bytes=int(vmem_limit)),
            cost_estimate=cost,
        )(xp, lp, self.wl_all, self.b_all, *self.wx)

        mu = out[:B, :self.latent_dim]
        log_var = out[:B, self.latent_dim:2 * self.latent_dim]
        return mu, log_var

    # Pure-JAX reference (same padded bf16-operand / f32-accumulate math).
    def reference(self, x, labels):
        B = x.shape[0]
        xp = jnp.zeros((B, self.in_pad), jnp.float32)
        xp = xp.at[:, :self.input_dim].set(x)
        lab = labels.astype(jnp.bfloat16)
        lab_all = jnp.dot(lab, self.wl_all,
                          preferred_element_type=jnp.float32) + self.b_all
        h = xp
        for i in range(len(self.wx)):
            off, w = self.offsets[i], self.out_pads[i]
            z = jnp.dot(h.astype(jnp.bfloat16), self.wx[i],
                        preferred_element_type=jnp.float32)
            z = z + lab_all[:, off:off + w]
            h = jnp.where(z > 0, z, 0.2 * z) if i < len(self.wx) - 1 else z
        return h[:, :self.latent_dim], h[:, self.latent_dim:2 * self.latent_dim]


if __name__ == "__main__":
    key = jax.random.PRNGKey(0)
    k_x, k_lab, k_params = jax.random.split(key, 3)

    # Small shapes consistent with the module's forward:
    # x: [B, input_dim], labels: [B, n_classes] (one-hot).
    B, input_dim, n_classes, latent_dim = 8, 32, 4, 8
    hidden_dims = [64, 32, 16]

    x = jax.random.normal(k_x, (B, input_dim), dtype=jnp.float32)
    labels = jax.nn.one_hot(
        jax.random.randint(k_lab, (B,), 0, n_classes), n_classes
    ).astype(jnp.float32)

    enc = EncoderPallas(input_dim, n_classes, latent_dim,
                        hidden_dims=hidden_dims, key=k_params)

    mu, log_var = enc(x, labels)
    jax.block_until_ready((mu, log_var))

    mu_ref, log_var_ref = enc.reference(x, labels)
    assert mu.shape == (B, latent_dim) and log_var.shape == (B, latent_dim)
    assert jnp.allclose(mu, mu_ref, atol=1e-3, rtol=1e-3)
    assert jnp.allclose(log_var, log_var_ref, atol=1e-3, rtol=1e-3)

    print("KERNEL_OK")
</pallas_src>

<mosaic_0001>
module attributes {stable_mosaic.version = 11 : i64} {
  func.func @_encoder_kernel(%arg0: i32, %arg1: memref<8x128xbf16, #tpu.memory_space<vmem>>, %arg2: memref<8x4xbf16, #tpu.memory_space<vmem>>, %arg3: memref<4x512xbf16, #tpu.memory_space<vmem>>, %arg4: memref<1x512xf32, #tpu.memory_space<vmem>>, %arg5: memref<128x128xbf16, #tpu.memory_space<vmem>>, %arg6: memref<128x128xbf16, #tpu.memory_space<vmem>>, %arg7: memref<128x128xbf16, #tpu.memory_space<vmem>>, %arg8: memref<128x128xbf16, #tpu.memory_space<vmem>>, %arg9: memref<8x128xf32, #tpu.memory_space<vmem>>) attributes {dimension_semantics = [#tpu.dimension_semantics<parallel>], iteration_bounds = array<i64: 1>, scalar_prefetch = 0 : i64, scratch_operands = 0 : i64, tpu.core_type = #tpu.core_type<tc>, window_params = [{transform_indices = @transform_0, window_bounds = array<i64: 8, 128>}, {transform_indices = @transform_1, window_bounds = array<i64: 8, 4>}, {pipeline_mode = #tpu.pipeline_mode<synchronous>, transform_indices = @transform_2, window_bounds = array<i64: 4, 512>}, {pipeline_mode = #tpu.pipeline_mode<synchronous>, transform_indices = @transform_3, window_bounds = array<i64: 1, 512>}, {pipeline_mode = #tpu.pipeline_mode<synchronous>, transform_indices = @transform_4, window_bounds = array<i64: 128, 128>}, {pipeline_mode = #tpu.pipeline_mode<synchronous>, transform_indices = @transform_5, window_bounds = array<i64: 128, 128>}, {pipeline_mode = #tpu.pipeline_mode<synchronous>, transform_indices = @transform_6, window_bounds = array<i64: 128, 128>}, {pipeline_mode = #tpu.pipeline_mode<synchronous>, transform_indices = @transform_7, window_bounds = array<i64: 128, 128>}, {transform_indices = @transform_8, window_bounds = array<i64: 8, 128>}]} {
    %c0 = arith.constant 0 : index
    %c0_0 = arith.constant 0 : index
    %0 = vector.load %arg2[%c0, %c0_0] : memref<8x4xbf16, #tpu.memory_space<vmem>>, vector<8x4xbf16>
    %c0_1 = arith.constant 0 : index
    %c0_2 = arith.constant 0 : index
    %1 = vector.load %arg3[%c0_1, %c0_2] : memref<4x512xbf16, #tpu.memory_space<vmem>>, vector<4x512xbf16>
    %cst = arith.constant dense<0.000000e+00> : vector<8x512xf32>
    %2 = tpu.matmul %0, %1, %cst {dimension_numbers = #tpu.dot_dimension_numbers<[1], [0], [0], [1], [0, 0, 1, 1], [], []>} : vector<8x4xbf16>, vector<4x512xbf16>, vector<8x512xf32> -> vector<8x512xf32>
    %c0_3 = arith.constant 0 : index
    %c0_4 = arith.constant 0 : index
    %3 = vector.load %arg4[%c0_3, %c0_4] : memref<1x512xf32, #tpu.memory_space<vmem>>, vector<1x512xf32>
    %4 = vector.broadcast %3 : vector<1x512xf32> to vector<8x512xf32>
    %5 = arith.addf %2, %4 : vector<8x512xf32>
    %c0_5 = arith.constant 0 : index
    %c0_6 = arith.constant 0 : index
    %6 = vector.load %arg1[%c0_5, %c0_6] : memref<8x128xbf16, #tpu.memory_space<vmem>>, vector<8x128xbf16>
    %c0_7 = arith.constant 0 : index
    %c0_8 = arith.constant 0 : index
    %7 = vector.load %arg5[%c0_7, %c0_8] : memref<128x128xbf16, #tpu.memory_space<vmem>>, vector<128x128xbf16>
    %cst_9 = arith.constant dense<0.000000e+00> : vector<8x128xf32>
    %8 = tpu.matmul %6, %7, %cst_9 {dimension_numbers = #tpu.dot_dimension_numbers<[1], [0], [0], [1], [0, 0, 1, 1], [], []>} : vector<8x128xbf16>, vector<128x128xbf16>, vector<8x128xf32> -> vector<8x128xf32>
    %9 = vector.extract_strided_slice %5 {offsets = [0, 0], sizes = [8, 128], strides = [1, 1]} : vector<8x512xf32> to vector<8x128xf32>
    %10 = arith.addf %8, %9 : vector<8x128xf32>
    %cst_10 = arith.constant 0.000000e+00 : f32
    %11 = vector.broadcast %cst_10 : f32 to vector<8x128xf32>
    %12 = arith.cmpf ogt, %10, %11 : vector<8x128xf32>
    %cst_11 = arith.constant 2.000000e-01 : f32
    %13 = vector.broadcast %cst_11 : f32 to vector<8x128xf32>
    %14 = arith.mulf %13, %10 : vector<8x128xf32>
    %15 = arith.select %12, %10, %14 : vector<8x128xi1>, vector<8x128xf32>
    %16 = arith.truncf %15 : vector<8x128xf32> to vector<8x128xbf16>
    %c0_12 = arith.constant 0 : index
    %c0_13 = arith.constant 0 : index
    %17 = vector.load %arg6[%c0_12, %c0_13] : memref<128x128xbf16, #tpu.memory_space<vmem>>, vector<128x128xbf16>
    %cst_14 = arith.constant dense<0.000000e+00> : vector<8x128xf32>
    %18 = tpu.matmul %16, %17, %cst_14 {dimension_numbers = #tpu.dot_dimension_numbers<[1], [0], [0], [1], [0, 0, 1, 1], [], []>} : vector<8x128xbf16>, vector<128x128xbf16>, vector<8x128xf32> -> vector<8x128xf32>
    %19 = vector.extract_strided_slice %5 {offsets = [0, 128], sizes = [8, 128], strides = [1, 1]} : vector<8x512xf32> to vector<8x128xf32>
    %20 = arith.addf %18, %19 : vector<8x128xf32>
    %cst_15 = arith.constant 0.000000e+00 : f32
    %21 = vector.broadcast %cst_15 : f32 to vector<8x128xf32>
    %22 = arith.cmpf ogt, %20, %21 : vector<8x128xf32>
    %cst_16 = arith.constant 2.000000e-01 : f32
    %23 = vector.broadcast %cst_16 : f32 to vector<8x128xf32>
    %24 = arith.mulf %23, %20 : vector<8x128xf32>
    %25 = arith.select %22, %20, %24 : vector<8x128xi1>, vector<8x128xf32>
    %26 = arith.truncf %25 : vector<8x128xf32> to vector<8x128xbf16>
    %c0_17 = arith.constant 0 : index
    %c0_18 = arith.constant 0 : index
    %27 = vector.load %arg7[%c0_17, %c0_18] : memref<128x128xbf16, #tpu.memory_space<vmem>>, vector<128x128xbf16>
    %cst_19 = arith.constant dense<0.000000e+00> : vector<8x128xf32>
    %28 = tpu.matmul %26, %27, %cst_19 {dimension_numbers = #tpu.dot_dimension_numbers<[1], [0], [0], [1], [0, 0, 1, 1], [], []>} : vector<8x128xbf16>, vector<128x128xbf16>, vector<8x128xf32> -> vector<8x128xf32>
    %29 = vector.extract_strided_slice %5 {offsets = [0, 256], sizes = [8, 128], strides = [1, 1]} : vector<8x512xf32> to vector<8x128xf32>
    %30 = arith.addf %28, %29 : vector<8x128xf32>
    %cst_20 = arith.constant 0.000000e+00 : f32
    %31 = vector.broadcast %cst_20 : f32 to vector<8x128xf32>
    %32 = arith.cmpf ogt, %30, %31 : vector<8x128xf32>
    %cst_21 = arith.constant 2.000000e-01 : f32
    %33 = vector.broadcast %cst_21 : f32 to vector<8x128xf32>
    %34 = arith.mulf %33, %30 : vector<8x128xf32>
    %35 = arith.select %32, %30, %34 : vector<8x128xi1>, vector<8x128xf32>
    %36 = arith.truncf %35 : vector<8x128xf32> to vector<8x128xbf16>
    %c0_22 = arith.constant 0 : index
    %c0_23 = arith.constant 0 : index
    %37 = vector.load %arg8[%c0_22, %c0_23] : memref<128x128xbf16, #tpu.memory_space<vmem>>, vector<128x128xbf16>
    %cst_24 = arith.constant dense<0.000000e+00> : vector<8x128xf32>
    %38 = tpu.matmul %36, %37, %cst_24 {dimension_numbers = #tpu.dot_dimension_numbers<[1], [0], [0], [1], [0, 0, 1, 1], [], []>} : vector<8x128xbf16>, vector<128x128xbf16>, vector<8x128xf32> -> vector<8x128xf32>
    %39 = vector.extract_strided_slice %5 {offsets = [0, 384], sizes = [8, 128], strides = [1, 1]} : vector<8x512xf32> to vector<8x128xf32>
    %40 = arith.addf %38, %39 : vector<8x128xf32>
    %c0_25 = arith.constant 0 : index
    %c0_26 = arith.constant 0 : index
    %41 = vector.load %arg9[%c0_25, %c0_26] : memref<8x128xf32, #tpu.memory_space<vmem>>, vector<8x128xf32>
    tpu.vector_store %arg9[%c0_25, %c0_26], %40 {strides = array<i32>} : memref<8x128xf32, #tpu.memory_space<vmem>>, vector<8x128xf32>,
    return
  }
  func.func @transform_0(%arg0: i32) -> (i32, i32) {
    %c0_i32 = arith.constant 0 : i32
    %c0_i32_0 = arith.constant 0 : i32
    return %arg0, %c0_i32 : i32, i32
  }
  func.func @transform_1(%arg0: i32) -> (i32, i32) {
    %c0_i32 = arith.constant 0 : i32
    %c0_i32_0 = arith.constant 0 : i32
    return %arg0, %c0_i32 : i32, i32
  }
  func.func @transform_2(%arg0: i32) -> (i32, i32) {
    %c0_i32 = arith.constant 0 : i32
    %c0_i32_0 = arith.constant 0 : i32
    %c0_i32_1 = arith.constant 0 : i32
    return %c0_i32, %c0_i32_0 : i32, i32
  }
  func.func @transform_3(%arg0: i32) -> (i32, i32) {
    %c0_i32 = arith.constant 0 : i32
    %c0_i32_0 = arith.constant 0 : i32
    %c0_i32_1 = arith.constant 0 : i32
    return %c0_i32, %c0_i32_0 : i32, i32
  }
  func.func @transform_4(%arg0: i32) -> (i32, i32) {
    %c0_i32 = arith.constant 0 : i32
    %c0_i32_0 = arith.constant 0 : i32
    %c0_i32_1 = arith.constant 0 : i32
    return %c0_i32, %c0_i32_0 : i32, i32
  }
  func.func @transform_5(%arg0: i32) -> (i32, i32) {
    %c0_i32 = arith.constant 0 : i32
    %c0_i32_0 = arith.constant 0 : i32
    %c0_i32_1 = arith.constant 0 : i32
    return %c0_i32, %c0_i32_0 : i32, i32
  }
  func.func @transform_6(%arg0: i32) -> (i32, i32) {
    %c0_i32 = arith.constant 0 : i32
    %c0_i32_0 = arith.constant 0 : i32
    %c0_i32_1 = arith.constant 0 : i32
    return %c0_i32, %c0_i32_0 : i32, i32
  }
  func.func @transform_7(%arg0: i32) -> (i32, i32) {
    %c0_i32 = arith.constant 0 : i32
    %c0_i32_0 = arith.constant 0 : i32
    %c0_i32_1 = arith.constant 0 : i32
    return %c0_i32, %c0_i32_0 : i32, i32
  }
  func.func @transform_8(%arg0: i32) -> (i32, i32) {
    %c0_i32 = arith.constant 0 : i32
    %c0_i32_0 = arith.constant 0 : i32
    return %arg0, %c0_i32 : i32, i32
  }
}

</mosaic_0001>

<llo_original>
// kernel: tpu_custom_call.1
$region0: #{tpu_custom_call.1}
  #allocation0 [shape = 'u32[]', space=smem, size = 0x4, offset = 0x4, fixed_abs, tag = 'smem constant byte address 0x4 - core index']
  #allocation1 [shape = 'u32[144,128]{1,0:T(1,128)}', space=vmem, size = 0x12000, scoped, tag = 'internal scratch']
  %s0 = inlined_call_operand.vmem [shape: bf16[8,128], index: 0, kind: input, shape index: {}]
  %s1 = inlined_call_operand.vmem [shape: bf16[8,4], index: 1, kind: input, shape index: {}]
  %s2 = inlined_call_operand.vmem [shape: bf16[4,512], index: 2, kind: input, shape index: {}]
  %s3 = inlined_call_operand.vmem [shape: f32[1,512], index: 3, kind: input, shape index: {}]
  %s4 = inlined_call_operand.hbm [shape: bf16[128,128], index: 4, kind: input, shape index: {}]
  %s5 = inlined_call_operand.hbm [shape: bf16[128,128], index: 5, kind: input, shape index: {}]
  %s6 = inlined_call_operand.hbm [shape: bf16[128,128], index: 6, kind: input, shape index: {}]
  %s7 = inlined_call_operand.hbm [shape: bf16[128,128], index: 7, kind: input, shape index: {}]
  %s8 = inlined_call_operand.hbm [shape: f32[8,128], index: 8, kind: output, shape index: {}]
  %s9 = sld [smem:[#allocation0]]
  $region58: #{tpu_custom_call.1} parent=0
    _
  %s11 = ssub.s32 1, %s9
  %s12 = scalar_select 0, %s11, %s9
  $region1: #{tpu_custom_call.1} parent=0
    #allocation2 [shape = 'u8[32768]{0}', space=vmem, size = 0x8000, scoped, tag = 'input window, operand 4, single buffered']
    #allocation3 [shape = 's32[1]{0}', space=sflag, size = 0x4, scoped, tag = 'scoped memory for tpu_custom_call.1']
    #allocation4 [shape = 's32[1]{0}', space=sflag, size = 0x4, scoped, tag = 'scoped memory for tpu_custom_call.1']
    #allocation5 [shape = 'u8[32768]{0}', space=vmem, size = 0x8000, scoped, tag = 'input window, operand 5, single buffered']
    #allocation6 [shape = 's32[1]{0}', space=sflag, size = 0x4, scoped, tag = 'scoped memory for tpu_custom_call.1']
    #allocation7 [shape = 'u8[32768]{0}', space=vmem, size = 0x8000, scoped, tag = 'input window, operand 6, single buffered']
    #allocation8 [shape = 'u8[32768]{0}', space=vmem, size = 0x8000, scoped, tag = 'input window, operand 7, single buffered']
    #allocation9 [shape = 's32[1]{0}', space=sflag, size = 0x4, scoped, tag = 'scoped memory for tpu_custom_call.1']
    #allocation10 [shape = 'u8[4096]{0}', space=vmem, size = 0x1000, scoped, tag = 'output window, operand 0, single buffered']
    %13 = vsyncpa [#allocation3], 0
    %14 = vsyncpa [#allocation6], 0
    %15 = vsyncpa [#allocation9], 0
    %16 = vsyncpa [#allocation4], 0
    // Predicated region
    $region2: #{tpu_custom_call.1} parent=1 // pred_check
      _
    $region3: #{tpu_custom_call.1} parent=1 // pred_check_branch
      %18 = sbr.rel (0) target = $region5
    $region4: #{tpu_custom_call.1} parent=1 // pred_region
      _
    $region5: #{tpu_custom_call.1} parent=1 // pred_fallthru
      _
    // Predicated region
    $region6: #{tpu_custom_call.1} parent=1 // pred_check
      _
    $region7: #{tpu_custom_call.1} parent=1 // pred_check_branch
      %20 = sbr.rel (0) target = $region9
    $region8: #{tpu_custom_call.1} parent=1 // pred_region
      _
    $region9: #{tpu_custom_call.1} parent=1 // pred_fallthru
      _
    // Predicated region
    $region10: #{tpu_custom_call.1} parent=1 // pred_check
      _
    $region11: #{tpu_custom_call.1} parent=1 // pred_check_branch
      %22 = sbr.rel (0) target = $region13
    $region12: #{tpu_custom_call.1} parent=1 // pred_region
      _
    $region13: #{tpu_custom_call.1} parent=1 // pred_fallthru
      _
    // Predicated region
    $region14: #{tpu_custom_call.1} parent=1 // pred_check
      _
    $region15: #{tpu_custom_call.1} parent=1 // pred_check_branch
      %24 = sbr.rel (0) target = $region17
    $region16: #{tpu_custom_call.1} parent=1 // pred_region
      _
    $region17: #{tpu_custom_call.1} parent=1 // pred_fallthru
      _
    // Predicated region
    $region18: #{tpu_custom_call.1} parent=1 // pred_check
      _
    $region19: #{tpu_custom_call.1} parent=1 // pred_check_branch
      %26 = sbr.rel (0) target = $region21
    $region20: #{tpu_custom_call.1} parent=1 // pred_region
      %s28 = ssub.s32 1024, 1024
      %29 = vsyncadd [#allocation3], %s28
      %s30 = sshll.u32 [#allocation2], 4
      %s31 = int_to_ptr.vmem [resolvable:$true] %s30
      %36 = dma.hbm_to_vmem [thread:$0]  %s4, 1024, %s31, [#allocation3], 64, 64, 4
    $region21: #{tpu_custom_call.1} parent=1 // pred_fallthru
      _
    // Predicated region
    $region22: #{tpu_custom_call.1} parent=1 // pred_check
      _
    $region23: #{tpu_custom_call.1} parent=1 // pred_check_branch
      %38 = sbr.rel (0) target = $region25
    $region24: #{tpu_custom_call.1} parent=1 // pred_region
      %s40 = ssub.s32 1024, 1024
      %41 = vsyncadd [#allocation6], %s40
      %s42 = sshll.u32 [#allocation5], 4
      %s43 = int_to_ptr.vmem [resolvable:$true] %s42
      %48 = dma.hbm_to_vmem [thread:$0]  %s5, 1024, %s43, [#allocation6], 64, 64, 4
    $region25: #{tpu_custom_call.1} parent=1 // pred_fallthru
      _
    // Predicated region
    $region26: #{tpu_custom_call.1} parent=1 // pred_check
      _
    $region27: #{tpu_custom_call.1} parent=1 // pred_check_branch
      %50 = sbr.rel (0) target = $region29
    $region28: #{tpu_custom_call.1} parent=1 // pred_region
      %s52 = ssub.s32 1024, 1024
      %53 = vsyncadd [#allocation6], %s52
      %s54 = sshll.u32 [#allocation7], 4
      %s55 = int_to_ptr.vmem [resolvable:$true] %s54
      %60 = dma.hbm_to_vmem [thread:$0]  %s6, 1024, %s55, [#allocation6], 64, 64, 4
    $region29: #{tpu_custom_call.1} parent=1 // pred_fallthru
      _
    // Predicated region
    $region30: #{tpu_custom_call.1} parent=1 // pred_check
      _
    $region31: #{tpu_custom_call.1} parent=1 // pred_check_branch
      %62 = sbr.rel (0) target = $region33
    $region32: #{tpu_custom_call.1} parent=1 // pred_region
      %s64 = ssub.s32 1024, 1024
      %65 = vsyncadd [#allocation9], %s64
      %s66 = sshll.u32 [#allocation8], 4
      %s67 = int_to_ptr.vmem [resolvable:$true] %s66
      %72 = dma.hbm_to_vmem [thread:$0]  %s7, 1024, %s67, [#allocation9], 64, 64, 4
    $region33: #{tpu_custom_call.1} parent=1 // pred_fallthru
      _
    // Predicated region
    $region34: #{tpu_custom_call.1} parent=1 // pred_check
      _
    $region35: #{tpu_custom_call.1} parent=1 // pred_check_branch
      %74 = sbr.rel (0) target = $region37
    $region36: #{tpu_custom_call.1} parent=1 // pred_region
      %75 = dma.done [#allocation3], 1024
    $region37: #{tpu_custom_call.1} parent=1 // pred_fallthru
      _
    // Predicated region
    $region38: #{tpu_custom_call.1} parent=1 // pred_check
      _
    $region39: #{tpu_custom_call.1} parent=1 // pred_check_branch
      %77 = sbr.rel (0) target = $region41
    $region40: #{tpu_custom_call.1} parent=1 // pred_region
      %78 = dma.done [#allocation6], 1024
    $region41: #{tpu_custom_call.1} parent=1 // pred_fallthru
      _
    // Predicated region
    $region42: #{tpu_custom_call.1} parent=1 // pred_check
      _
    $region43: #{tpu_custom_call.1} parent=1 // pred_check_branch
      %80 = sbr.rel (0) target = $region45
    $region44: #{tpu_custom_call.1} parent=1 // pred_region
      %81 = dma.done [#allocation6], 1024
    $region45: #{tpu_custom_call.1} parent=1 // pred_fallthru
      _
    // Predicated region
    $region46: #{tpu_custom_call.1} parent=1 // pred_check
      _
    $region47: #{tpu_custom_call.1} parent=1 // pred_check_branch
      %83 = sbr.rel (0) target = $region49
    $region48: #{tpu_custom_call.1} parent=1 // pred_region
      %84 = dma.done [#allocation9], 1024
    $region49: #{tpu_custom_call.1} parent=1 // pred_fallthru
      _
    %v86 = vld [vmem:[%s1] sm:$0xf]
    %v87 = vld [vmem:[%s2] sm:$0xff]
    %v88 = vld [vmem:[%s3] sm:$0xf]
    %v90 = vlaneseq
    %v91 = vshrl.u32 %v90, 7
    %v92 = vsub.s32 0, %v91
    %v93 = vrot.slane %v88, %v92
    %v94 = vlaneseq
    %v95 = vshrl.u32 %v94, 7
    %v96 = vsub.s32 1, %v95
    %v97 = vrot.slane %v88, %v96
    %v98 = vlaneseq
    %v99 = vshrl.u32 %v98, 7
    %v100 = vsub.s32 2, %v99
    %v101 = vrot.slane %v88, %v100
    %v102 = vlaneseq
    %v103 = vshrl.u32 %v102, 7
    %v104 = vsub.s32 3, %v103
    %v105 = vrot.slane %v88, %v104
    %v111 = vcombine.high %v87, %v87
    %v113 = vunpack.c.l.s4 1983009808
    %v114 = vunpack.c.0.s8 %v113
    %v115 = vlaneseq
    %v116 = vshrl.u32 %v115, 7
    %v117 = vsub.s32 %v114, %v116
    %v118 = vrot.slane %v87, %v117
    %v120 = vunpack.c.l.s4 1983009808
    %v121 = vunpack.c.0.s8 %v120
    %v122 = vlaneseq
    %v123 = vshrl.u32 %v122, 7
    %v124 = vsub.s32 %v121, %v123
    %v125 = vrot.slane %v111, %v124
    %v126 = vcombine.high %v118, %v118
    %v127 = vcombine.high %v125, %v125
    %vm128 = vcmask 31744
    %v130 = vsel %vm128, %v86, 0
    %vm132 = vcmask 1041408
    %v134 = vsel %vm132, %v118, 0
    %v137 = vsel %vm132, %v126, 0
    %v140 = vsel %vm132, %v125, 0
    %v143 = vsel %vm132, %v127, 0
    %145 = vmatprep.subr.bf16.mxu0 %v137
    %146 = vmatpush1.bf16.msra.mxu0 %v134
    %147 = vmatprep.subr.bf16.mxu0 0
    %148 = vmatpush1.bf16.msra.mxu0 0
    %149 = vmatprep.subr.bf16.mxu0 0
    %150 = vmatpush1.bf16.msra.mxu0 0
    %151 = vmatprep.subr.bf16.mxu0 0
    %152 = vmatpush1.bf16.msra.mxu0 0
    %153 = vmatprep.subr.bf16.mxu0 0
    %154 = vmatpush1.bf16.msra.mxu0 0
    %155 = vmatprep.subr.bf16.mxu0 0
    %156 = vmatpush1.bf16.msra.mxu0 0
    %157 = vmatprep.subr.bf16.mxu0 0
    %158 = vmatpush1.bf16.msra.mxu0 0
    %159 = vmatprep.subr.bf16.mxu0 0
    %160 = vmatpush1.bf16.msra.mxu0 0
    %161 = vmatprep.subr.bf16.mxu0 0
    %162 = vmatpush1.bf16.msra.mxu0 0
    %163 = vmatprep.subr.bf16.mxu0 0
    %164 = vmatpush1.bf16.msra.mxu0 0
    %165 = vmatprep.subr.bf16.mxu0 0
    %166 = vmatpush1.bf16.msra.mxu0 0
    %167 = vmatprep.subr.bf16.mxu0 0
    %168 = vmatpush1.bf16.msra.mxu0 0
    %169 = vmatprep.subr.bf16.mxu0 0
    %170 = vmatpush1.bf16.msra.mxu0 0
    %171 = vmatprep.subr.bf16.mxu0 0
    %172 = vmatpush1.bf16.msra.mxu0 0
    %173 = vmatprep.subr.bf16.mxu0 0
    %174 = vmatpush1.bf16.msra.mxu0 0
    %175 = vmatprep.subr.bf16.mxu0 0
    %176 = vmatpush1.bf16.msra.mxu0 0
    %177 = vmatprep.mubr.bf16.mxu0 0
    %178 = vmatmul.mubr.bf16.gmra.mrb[0].mxu0 %v130
    %v179 = vpop.f32.mrb[0].mxu0
    %v180 = vadd.f32 %v93, %v179
    %v181 = vpop.f32.mrb[0].mxu0
    %v182 = vadd.f32 %v97, %v181
    %v183 = vpop.f32.mrb[0].mxu0
    %v184 = vpop.f32.mrb[0].mxu0
    %185 = vdwg.mxu0
    %186 = vmatprep.subr.bf16.mxu0 %v143
    %187 = vmatpush1.bf16.msra.mxu0 %v140
    %188 = vmatprep.subr.bf16.mxu0 0
    %189 = vmatpush1.bf16.msra.mxu0 0
    %190 = vmatprep.subr.bf16.mxu0 0
    %191 = vmatpush1.bf16.msra.mxu0 0
    %192 = vmatprep.subr.bf16.mxu0 0
    %193 = vmatpush1.bf16.msra.mxu0 0
    %194 = vmatprep.subr.bf16.mxu0 0
    %195 = vmatpush1.bf16.msra.mxu0 0
    %196 = vmatprep.subr.bf16.mxu0 0
    %197 = vmatpush1.bf16.msra.mxu0 0
    %198 = vmatprep.subr.bf16.mxu0 0
    %199 = vmatpush1.bf16.msra.mxu0 0
    %200 = vmatprep.subr.bf16.mxu0 0
    %201 = vmatpush1.bf16.msra.mxu0 0
    %202 = vmatprep.subr.bf16.mxu0 0
    %203 = vmatpush1.bf16.msra.mxu0 0
    %204 = vmatprep.subr.bf16.mxu0 0
    %205 = vmatpush1.bf16.msra.mxu0 0
    %206 = vmatprep.subr.bf16.mxu0 0
    %207 = vmatpush1.bf16.msra.mxu0 0
    %208 = vmatprep.subr.bf16.mxu0 0
    %209 = vmatpush1.bf16.msra.mxu0 0
    %210 = vmatprep.subr.bf16.mxu0 0
    %211 = vmatpush1.bf16.msra.mxu0 0
    %212 = vmatprep.subr.bf16.mxu0 0
    %213 = vmatpush1.bf16.msra.mxu0 0
    %214 = vmatprep.subr.bf16.mxu0 0
    %215 = vmatpush1.bf16.msra.mxu0 0
    %216 = vmatprep.subr.bf16.mxu0 0
    %217 = vmatpush1.bf16.msra.mxu0 0
    %218 = vmatprep.mubr.bf16.mxu0 0
    %219 = vmatmul.mubr.bf16.gmra.mrb[0].mxu0 %v130
    %v220 = vpop.f32.mrb[0].mxu0
    %v221 = vadd.f32 %v101, %v220
    %v222 = vpop.f32.mrb[0].mxu0
    %v223 = vadd.f32 %v105, %v222
    %v224 = vpop.f32.mrb[0].mxu0
    %v225 = vpop.f32.mrb[0].mxu0
    %226 = vdwg.mxu0
    %v227 = vld [vmem:[%s0] sm:$0xf]
    %v228 = vld [vmem:[#allocation2] sm:$0xf]
    %v229 = vld [vmem:[#allocation2 + $0x4] sm:$0xf]
    %v230 = vld [vmem:[#allocation2 + $0x8] sm:$0xf]
    %v231 = vld [vmem:[#allocation2 + $0xc] sm:$0xf]
    %v232 = vld [vmem:[#allocation2 + $0x10] sm:$0xf]
    %v233 = vld [vmem:[#allocation2 + $0x14] sm:$0xf]
    %v234 = vld [vmem:[#allocation2 + $0x18] sm:$0xf]
    %v235 = vld [vmem:[#allocation2 + $0x1c] sm:$0xf]
    %v236 = vld [vmem:[#allocation2 + $0x20] sm:$0xf]
    %v237 = vld [vmem:[#allocation2 + $0x24] sm:$0xf]
    %v238 = vld [vmem:[#allocation2 + $0x28] sm:$0xf]
    %v239 = vld [vmem:[#allocation2 + $0x2c] sm:$0xf]
    %v240 = vld [vmem:[#allocation2 + $0x30] sm:$0xf]
    %v241 = vld [vmem:[#allocation2 + $0x34] sm:$0xf]
    %v242 = vld [vmem:[#allocation2 + $0x38] sm:$0xf]
    %v243 = vld [vmem:[#allocation2 + $0x3c] sm:$0xf]
    %v260 = vunpack.c.l.b16 %v228
    %v261 = vunpack.c.l.b16 %v229
    %v262 = vunpack.c.l.b16 %v230
    %v263 = vunpack.c.l.b16 %v231
    %v264 = vunpack.c.l.b16 %v232
    %v265 = vunpack.c.l.b16 %v233
    %v266 = vunpack.c.l.b16 %v234
    %v267 = vunpack.c.l.b16 %v235
    %v268 = vunpack.c.l.b16 %v236
    %v269 = vunpack.c.l.b16 %v237
    %v270 = vunpack.c.l.b16 %v238
    %v271 = vunpack.c.l.b16 %v239
    %v272 = vunpack.c.l.b16 %v240
    %v273 = vunpack.c.l.b16 %v241
    %v274 = vunpack.c.l.b16 %v242
    %v275 = vunpack.c.l.b16 %v243
    %v276 = vpack.c.b16 %v261, %v260
    %v277 = vpack.c.b16 %v263, %v262
    %v278 = vpack.c.b16 %v265, %v264
    %v279 = vpack.c.b16 %v267, %v266
    %v280 = vpack.c.b16 %v269, %v268
    %v281 = vpack.c.b16 %v271, %v270
    %v282 = vpack.c.b16 %v273, %v272
    %v283 = vpack.c.b16 %v275, %v274
    %292 = vmatprep.subr.bf16.mxu0 0
    %293 = vmatpush1.bf16.msra.mxu0 %v276
    %294 = vmatprep.subr.bf16.mxu0 0
    %295 = vmatpush1.bf16.msra.mxu0 %v277
    %296 = vmatprep.subr.bf16.mxu0 0
    %297 = vmatpush1.bf16.msra.mxu0 %v278
    %298 = vmatprep.subr.bf16.mxu0 0
    %299 = vmatpush1.bf16.msra.mxu0 %v279
    %300 = vmatprep.subr.bf16.mxu0 0
    %301 = vmatpush1.bf16.msra.mxu0 %v280
    %302 = vmatprep.subr.bf16.mxu0 0
    %303 = vmatpush1.bf16.msra.mxu0 %v281
    %304 = vmatprep.subr.bf16.mxu0 0
    %305 = vmatpush1.bf16.msra.mxu0 %v282
    %306 = vmatprep.subr.bf16.mxu0 0
    %307 = vmatpush1.bf16.msra.mxu0 %v283
    %308 = vmatprep.subr.bf16.mxu0 0
    %309 = vmatpush1.bf16.msra.mxu0 0
    %310 = vmatprep.subr.bf16.mxu0 0
    %311 = vmatpush1.bf16.msra.mxu0 0
    %312 = vmatprep.subr.bf16.mxu0 0
    %313 = vmatpush1.bf16.msra.mxu0 0
    %314 = vmatprep.subr.bf16.mxu0 0
    %315 = vmatpush1.bf16.msra.mxu0 0
    %316 = vmatprep.subr.bf16.mxu0 0
    %317 = vmatpush1.bf16.msra.mxu0 0
    %318 = vmatprep.subr.bf16.mxu0 0
    %319 = vmatpush1.bf16.msra.mxu0 0
    %320 = vmatprep.subr.bf16.mxu0 0
    %321 = vmatpush1.bf16.msra.mxu0 0
    %322 = vmatprep.subr.bf16.mxu0 0
    %323 = vmatpush1.bf16.msra.mxu0 0
    %324 = vmatprep.mubr.bf16.mxu0 0
    %325 = vmatmul.mubr.bf16.gmra.mrb[0].mxu0 %v227
    %v326 = vpop.f32.mrb[0].mxu0
    %v327 = vadd.f32 %v180, %v326
    %v328 = vpop.f32.mrb[0].mxu0
    %v329 = vpop.f32.mrb[0].mxu0
    %v330 = vpop.f32.mrb[0].mxu0
    %331 = vdwg.mxu0
    %vm332 = vcmp.gt.f32.partialorder %v327, 0.0
    %v333 = vmul.f32 %v327, 0.2
    %v334 = vsel %vm332, %v327, %v333
    %v335 = vpack.c.bf16 %v334, %v334
    %v336 = vld [vmem:[#allocation5] sm:$0xf]
    %v337 = vld [vmem:[#allocation5 + $0x4] sm:$0xf]
    %v338 = vld [vmem:[#allocation5 + $0x8] sm:$0xf]
    %v339 = vld [vmem:[#allocation5 + $0xc] sm:$0xf]
    %v340 = vld [vmem:[#allocation5 + $0x10] sm:$0xf]
    %v341 = vld [vmem:[#allocation5 + $0x14] sm:$0xf]
    %v342 = vld [vmem:[#allocation5 + $0x18] sm:$0xf]
    %v343 = vld [vmem:[#allocation5 + $0x1c] sm:$0xf]
    %v344 = vld [vmem:[#allocation5 + $0x20] sm:$0xf]
    %v345 = vld [vmem:[#allocation5 + $0x24] sm:$0xf]
    %v346 = vld [vmem:[#allocation5 + $0x28] sm:$0xf]
    %v347 = vld [vmem:[#allocation5 + $0x2c] sm:$0xf]
    %v348 = vld [vmem:[#allocation5 + $0x30] sm:$0xf]
    %v349 = vld [vmem:[#allocation5 + $0x34] sm:$0xf]
    %v350 = vld [vmem:[#allocation5 + $0x38] sm:$0xf]
    %v351 = vld [vmem:[#allocation5 + $0x3c] sm:$0xf]
    %v368 = vunpack.c.l.b16 %v336
    %v369 = vunpack.c.l.b16 %v337
    %v370 = vunpack.c.l.b16 %v338
    %v371 = vunpack.c.l.b16 %v339
    %v372 = vunpack.c.l.b16 %v340
    %v373 = vunpack.c.l.b16 %v341
    %v374 = vunpack.c.l.b16 %v342
    %v375 = vunpack.c.l.b16 %v343
    %v376 = vunpack.c.l.b16 %v344
    %v377 = vunpack.c.l.b16 %v345
    %v378 = vunpack.c.l.b16 %v346
    %v379 = vunpack.c.l.b16 %v347
    %v380 = vunpack.c.l.b16 %v348
    %v381 = vunpack.c.l.b16 %v349
    %v382 = vunpack.c.l.b16 %v350
    %v383 = vunpack.c.l.b16 %v351
    %v384 = vpack.c.b16 %v369, %v368
    %v385 = vpack.c.b16 %v371, %v370
    %v386 = vpack.c.b16 %v373, %v372
    %v387 = vpack.c.b16 %v375, %v374
    %v388 = vpack.c.b16 %v377, %v376
    %v389 = vpack.c.b16 %v379, %v378
    %v390 = vpack.c.b16 %v381, %v380
    %v391 = vpack.c.b16 %v383, %v382
    %400 = vmatprep.subr.bf16.mxu0 0
    %401 = vmatpush1.bf16.msra.mxu0 %v384
    %402 = vmatprep.subr.bf16.mxu0 0
    %403 = vmatpush1.bf16.msra.mxu0 %v385
    %404 = vmatprep.subr.bf16.mxu0 0
    %405 = vmatpush1.bf16.msra.mxu0 %v386
    %406 = vmatprep.subr.bf16.mxu0 0
    %407 = vmatpush1.bf16.msra.mxu0 %v387
    %408 = vmatprep.subr.bf16.mxu0 0
    %409 = vmatpush1.bf16.msra.mxu0 %v388
    %410 = vmatprep.subr.bf16.mxu0 0
    %411 = vmatpush1.bf16.msra.mxu0 %v389
    %412 = vmatprep.subr.bf16.mxu0 0
    %413 = vmatpush1.bf16.msra.mxu0 %v390
    %414 = vmatprep.subr.bf16.mxu0 0
    %415 = vmatpush1.bf16.msra.mxu0 %v391
    %416 = vmatprep.subr.bf16.mxu0 0
    %417 = vmatpush1.bf16.msra.mxu0 0
    %418 = vmatprep.subr.bf16.mxu0 0
    %419 = vmatpush1.bf16.msra.mxu0 0
    %420 = vmatprep.subr.bf16.mxu0 0
    %421 = vmatpush1.bf16.msra.mxu0 0
    %422 = vmatprep.subr.bf16.mxu0 0
    %423 = vmatpush1.bf16.msra.mxu0 0
    %424 = vmatprep.subr.bf16.mxu0 0
    %425 = vmatpush1.bf16.msra.mxu0 0
    %426 = vmatprep.subr.bf16.mxu0 0
    %427 = vmatpush1.bf16.msra.mxu0 0
    %428 = vmatprep.subr.bf16.mxu0 0
    %429 = vmatpush1.bf16.msra.mxu0 0
    %430 = vmatprep.subr.bf16.mxu0 0
    %431 = vmatpush1.bf16.msra.mxu0 0
    %432 = vmatprep.mubr.bf16.mxu0 0
    %433 = vmatmul.mubr.bf16.gmra.mrb[0].mxu0 %v335
    %v434 = vpop.f32.mrb[0].mxu0
    %v435 = vadd.f32 %v182, %v434
    %v436 = vpop.f32.mrb[0].mxu0
    %v437 = vpop.f32.mrb[0].mxu0
    %v438 = vpop.f32.mrb[0].mxu0
    %439 = vdwg.mxu0
    %vm440 = vcmp.gt.f32.partialorder %v435, 0.0
    %v441 = vmul.f32 %v435, 0.2
    %v442 = vsel %vm440, %v435, %v441
    %v443 = vpack.c.bf16 %v442, %v442
    %v444 = vld [vmem:[#allocation7] sm:$0xf]
    %v445 = vld [vmem:[#allocation7 + $0x4] sm:$0xf]
    %v446 = vld [vmem:[#allocation7 + $0x8] sm:$0xf]
    %v447 = vld [vmem:[#allocation7 + $0xc] sm:$0xf]
    %v448 = vld [vmem:[#allocation7 + $0x10] sm:$0xf]
    %v449 = vld [vmem:[#allocation7 + $0x14] sm:$0xf]
    %v450 = vld [vmem:[#allocation7 + $0x18] sm:$0xf]
    %v451 = vld [vmem:[#allocation7 + $0x1c] sm:$0xf]
    %v452 = vld [vmem:[#allocation7 + $0x20] sm:$0xf]
    %v453 = vld [vmem:[#allocation7 + $0x24] sm:$0xf]
    %v454 = vld [vmem:[#allocation7 + $0x28] sm:$0xf]
    %v455 = vld [vmem:[#allocation7 + $0x2c] sm:$0xf]
    %v456 = vld [vmem:[#allocation7 + $0x30] sm:$0xf]
    %v457 = vld [vmem:[#allocation7 + $0x34] sm:$0xf]
    %v458 = vld [vmem:[#allocation7 + $0x38] sm:$0xf]
    %v459 = vld [vmem:[#allocation7 + $0x3c] sm:$0xf]
    %v476 = vunpack.c.l.b16 %v444
    %v477 = vunpack.c.l.b16 %v445
    %v478 = vunpack.c.l.b16 %v446
    %v479 = vunpack.c.l.b16 %v447
    %v480 = vunpack.c.l.b16 %v448
    %v481 = vunpack.c.l.b16 %v449
    %v482 = vunpack.c.l.b16 %v450
    %v483 = vunpack.c.l.b16 %v451
    %v484 = vunpack.c.l.b16 %v452
    %v485 = vunpack.c.l.b16 %v453
    %v486 = vunpack.c.l.b16 %v454
    %v487 = vunpack.c.l.b16 %v455
    %v488 = vunpack.c.l.b16 %v456
    %v489 = vunpack.c.l.b16 %v457
    %v490 = vunpack.c.l.b16 %v458
    %v491 = vunpack.c.l.b16 %v459
    %v492 = vpack.c.b16 %v477, %v476
    %v493 = vpack.c.b16 %v479, %v478
    %v494 = vpack.c.b16 %v481, %v480
    %v495 = vpack.c.b16 %v483, %v482
    %v496 = vpack.c.b16 %v485, %v484
    %v497 = vpack.c.b16 %v487, %v486
    %v498 = vpack.c.b16 %v489, %v488
    %v499 = vpack.c.b16 %v491, %v490
    %508 = vmatprep.subr.bf16.mxu0 0
    %509 = vmatpush1.bf16.msra.mxu0 %v492
    %510 = vmatprep.subr.bf16.mxu0 0
    %511 = vmatpush1.bf16.msra.mxu0 %v493
    %512 = vmatprep.subr.bf16.mxu0 0
    %513 = vmatpush1.bf16.msra.mxu0 %v494
    %514 = vmatprep.subr.bf16.mxu0 0
    %515 = vmatpush1.bf16.msra.mxu0 %v495
    %516 = vmatprep.subr.bf16.mxu0 0
    %517 = vmatpush1.bf16.msra.mxu0 %v496
    %518 = vmatprep.subr.bf16.mxu0 0
    %519 = vmatpush1.bf16.msra.mxu0 %v497
    %520 = vmatprep.subr.bf16.mxu0 0
    %521 = vmatpush1.bf16.msra.mxu0 %v498
    %522 = vmatprep.subr.bf16.mxu0 0
    %523 = vmatpush1.bf16.msra.mxu0 %v499
    %524 = vmatprep.subr.bf16.mxu0 0
    %525 = vmatpush1.bf16.msra.mxu0 0
    %526 = vmatprep.subr.bf16.mxu0 0
    %527 = vmatpush1.bf16.msra.mxu0 0
    %528 = vmatprep.subr.bf16.mxu0 0
    %529 = vmatpush1.bf16.msra.mxu0 0
    %530 = vmatprep.subr.bf16.mxu0 0
    %531 = vmatpush1.bf16.msra.mxu0 0
    %532 = vmatprep.subr.bf16.mxu0 0
    %533 = vmatpush1.bf16.msra.mxu0 0
    %534 = vmatprep.subr.bf16.mxu0 0
    %535 = vmatpush1.bf16.msra.mxu0 0
    %536 = vmatprep.subr.bf16.mxu0 0
    %537 = vmatpush1.bf16.msra.mxu0 0
    %538 = vmatprep.subr.bf16.mxu0 0
    %539 = vmatpush1.bf16.msra.mxu0 0
    %540 = vmatprep.mubr.bf16.mxu0 0
    %541 = vmatmul.mubr.bf16.gmra.mrb[0].mxu0 %v443
    %v542 = vpop.f32.mrb[0].mxu0
    %v543 = vadd.f32 %v221, %v542
    %v544 = vpop.f32.mrb[0].mxu0
    %v545 = vpop.f32.mrb[0].mxu0
    %v546 = vpop.f32.mrb[0].mxu0
    %547 = vdwg.mxu0
    %vm548 = vcmp.gt.f32.partialorder %v543, 0.0
    %v549 = vmul.f32 %v543, 0.2
    %v550 = vsel %vm548, %v543, %v549
    %v551 = vpack.c.bf16 %v550, %v550
    %v552 = vld [vmem:[#allocation8] sm:$0xf]
    %v553 = vld [vmem:[#allocation8 + $0x4] sm:$0xf]
    %v554 = vld [vmem:[#allocation8 + $0x8] sm:$0xf]
    %v555 = vld [vmem:[#allocation8 + $0xc] sm:$0xf]
    %v556 = vld [vmem:[#allocation8 + $0x10] sm:$0xf]
    %v557 = vld [vmem:[#allocation8 + $0x14] sm:$0xf]
    %v558 = vld [vmem:[#allocation8 + $0x18] sm:$0xf]
    %v559 = vld [vmem:[#allocation8 + $0x1c] sm:$0xf]
    %v560 = vld [vmem:[#allocation8 + $0x20] sm:$0xf]
    %v561 = vld [vmem:[#allocation8 + $0x24] sm:$0xf]
    %v562 = vld [vmem:[#allocation8 + $0x28] sm:$0xf]
    %v563 = vld [vmem:[#allocation8 + $0x2c] sm:$0xf]
    %v564 = vld [vmem:[#allocation8 + $0x30] sm:$0xf]
    %v565 = vld [vmem:[#allocation8 + $0x34] sm:$0xf]
    %v566 = vld [vmem:[#allocation8 + $0x38] sm:$0xf]
    %v567 = vld [vmem:[#allocation8 + $0x3c] sm:$0xf]
    %v584 = vunpack.c.l.b16 %v552
    %v585 = vunpack.c.l.b16 %v553
    %v586 = vunpack.c.l.b16 %v554
    %v587 = vunpack.c.l.b16 %v555
    %v588 = vunpack.c.l.b16 %v556
    %v589 = vunpack.c.l.b16 %v557
    %v590 = vunpack.c.l.b16 %v558
    %v591 = vunpack.c.l.b16 %v559
    %v592 = vunpack.c.l.b16 %v560
    %v593 = vunpack.c.l.b16 %v561
    %v594 = vunpack.c.l.b16 %v562
    %v595 = vunpack.c.l.b16 %v563
    %v596 = vunpack.c.l.b16 %v564
    %v597 = vunpack.c.l.b16 %v565
    %v598 = vunpack.c.l.b16 %v566
    %v599 = vunpack.c.l.b16 %v567
    %v600 = vpack.c.b16 %v585, %v584
    %v601 = vpack.c.b16 %v587, %v586
    %v602 = vpack.c.b16 %v589, %v588
    %v603 = vpack.c.b16 %v591, %v590
    %v604 = vpack.c.b16 %v593, %v592
    %v605 = vpack.c.b16 %v595, %v594
    %v606 = vpack.c.b16 %v597, %v596
    %v607 = vpack.c.b16 %v599, %v598
    %616 = vmatprep.subr.bf16.mxu0 0
    %617 = vmatpush1.bf16.msra.mxu0 %v600
    %618 = vmatprep.subr.bf16.mxu0 0
    %619 = vmatpush1.bf16.msra.mxu0 %v601
    %620 = vmatprep.subr.bf16.mxu0 0
    %621 = vmatpush1.bf16.msra.mxu0 %v602
    %622 = vmatprep.subr.bf16.mxu0 0
    %623 = vmatpush1.bf16.msra.mxu0 %v603
    %624 = vmatprep.subr.bf16.mxu0 0
    %625 = vmatpush1.bf16.msra.mxu0 %v604
    %626 = vmatprep.subr.bf16.mxu0 0
    %627 = vmatpush1.bf16.msra.mxu0 %v605
    %628 = vmatprep.subr.bf16.mxu0 0
    %629 = vmatpush1.bf16.msra.mxu0 %v606
    %630 = vmatprep.subr.bf16.mxu0 0
    %631 = vmatpush1.bf16.msra.mxu0 %v607
    %632 = vmatprep.subr.bf16.mxu0 0
    %633 = vmatpush1.bf16.msra.mxu0 0
    %634 = vmatprep.subr.bf16.mxu0 0
    %635 = vmatpush1.bf16.msra.mxu0 0
    %636 = vmatprep.subr.bf16.mxu0 0
    %637 = vmatpush1.bf16.msra.mxu0 0
    %638 = vmatprep.subr.bf16.mxu0 0
    %639 = vmatpush1.bf16.msra.mxu0 0
    %640 = vmatprep.subr.bf16.mxu0 0
    %641 = vmatpush1.bf16.msra.mxu0 0
    %642 = vmatprep.subr.bf16.mxu0 0
    %643 = vmatpush1.bf16.msra.mxu0 0
    %644 = vmatprep.subr.bf16.mxu0 0
    %645 = vmatpush1.bf16.msra.mxu0 0
    %646 = vmatprep.subr.bf16.mxu0 0
    %647 = vmatpush1.bf16.msra.mxu0 0
    %648 = vmatprep.mubr.bf16.mxu0 0
    %649 = vmatmul.mubr.bf16.gmra.mrb[0].mxu0 %v551
    %v650 = vpop.f32.mrb[0].mxu0
    %v651 = vadd.f32 %v223, %v650
    %v652 = vpop.f32.mrb[0].mxu0
    %v653 = vpop.f32.mrb[0].mxu0
    %v654 = vpop.f32.mrb[0].mxu0
    %655 = vdwg.mxu0
    %656 = vst [vmem:[#allocation10] sm:$0xff] %v651
    // Predicated region
    $region50: #{tpu_custom_call.1} parent=1 // pred_check
      _
    $region51: #{tpu_custom_call.1} parent=1 // pred_check_branch
      %658 = sbr.rel (0) target = $region53
    $region52: #{tpu_custom_call.1} parent=1 // pred_region
      %s660 = ssub.s32 128, 128
      %661 = vsyncadd [#allocation4], %s660
      %s663 = sshll.u32 [#allocation10], 4
      %s664 = int_to_ptr.vmem [resolvable:$true] %s663
      %666 = dma.vmem_to_hbm [thread:$0]  %s664, 128, %s8, [#allocation4]
    $region53: #{tpu_custom_call.1} parent=1 // pred_fallthru
      _
    // Predicated region
    $region54: #{tpu_custom_call.1} parent=1 // pred_check
      _
    $region55: #{tpu_custom_call.1} parent=1 // pred_check_branch
      %668 = sbr.rel (0) target = $region57
    $region56: #{tpu_custom_call.1} parent=1 // pred_region
      %669 = dma.done [#allocation4], 128
    $region57: #{tpu_custom_call.1} parent=1 // pred_fallthru
      _
    %670 = vsyncpa [#allocation3], 1
    %671 = vsyncpa [#allocation6], 1
    %672 = vsyncpa [#allocation9], 1
    %673 = vsyncpa [#allocation4], 1

</llo_original>
